<compile_context>
chip_gen: v7x
topology: tpu7x:2x2x1
jax: 0.10.0
libtpu: 0.0.40
codegen_flags: <defaults>
</compile_context>

<pallas_src>
import functools

import jax
import jax.numpy as jnp
from jax.experimental import pallas as pl
from jax.experimental.pallas import tpu as pltpu

BN_EPS = 1e-5


def _round_up(x, m):
    return (x + m - 1) // m * m


def _pick_tile(padded_dim, candidates=(512, 256, 128)):
    for c in candidates:
        if padded_dim % c == 0:
            return c
    return 128  # unreachable: padded_dim is always a multiple of 128


def basic_block_kernel(seed_ref, x_ref, w_ref, b_ref, g_ref, be_ref,
                       out_ref, acc_ref, *, drop_p):
    n_idx = pl.program_id(0)                 # feature-tile index ("parallel")
    k_idx = pl.program_id(1)                 # reduction-tile index ("arbitrary")
    nk = pl.num_programs(1)

    # ---- zero the f32 accumulator at the start of each reduction sweep ----
    @pl.when(k_idx == 0)
    def _():
        acc_ref[...] = jnp.zeros_like(acc_ref)

    # ---- Linear (partial): x(B,TK) bf16 . w(TN,TK)^T bf16 -> f32(B,TN) -------
    # Contract on the last dim of both operands (w stays in (out, in) layout).
    acc_ref[...] += jax.lax.dot_general(
        x_ref[...], w_ref[...],
        dimension_numbers=(((1,), (1,)), ((), ())),
        preferred_element_type=jnp.float32)

    # ---- epilogue on the last K step: bias + BN(train) + ReLU + Dropout ------
    @pl.when(k_idx == nk - 1)
    def _():
        y = acc_ref[...] + b_ref[...]                       # (B, TN) + (1, TN)

        # BatchNorm1d training mode: per-feature batch mean, biased variance.
        mean = jnp.mean(y, axis=0, keepdims=True)           # (1, TN)
        yc = y - mean                                       # hoisted once
        var = jnp.mean(yc * yc, axis=0, keepdims=True)
        z = g_ref[...] * (yc * jax.lax.rsqrt(var + BN_EPS)) + be_ref[...]

        # ReLU
        z = jnp.maximum(z, 0.0)

        if drop_p <= 0.0:                                   # static branch
            out_ref[...] = z.astype(out_ref.dtype)
        elif drop_p >= 1.0:                                 # static branch
            out_ref[...] = jnp.zeros_like(out_ref)
        else:
            # Counter-based hash PRNG: independent stream per (seed, tile).
            # Only jnp int ops -> lowers on Mosaic AND in interpret mode.
            shp = z.shape
            row = jax.lax.broadcasted_iota(jnp.int32, shp, 0)
            col = jax.lax.broadcasted_iota(jnp.int32, shp, 1)
            ctr = row * jnp.int32(shp[1]) + col              # within-tile index
            salt = (seed_ref[0] * jnp.int32(1103515245)
                    + n_idx * jnp.int32(1013904223)
                    + jnp.int32(12345))                      # scalar i32 (wraps)
            h = (ctr ^ salt).astype(jnp.uint32)
            # splitmix32-style finalizer
            h = (h ^ (h >> 16)) * jnp.uint32(0x7FEB352D)
            h = (h ^ (h >> 15)) * jnp.uint32(0x846CA68B)
            h = h ^ (h >> 16)
            threshold = jnp.uint32(min(int(round(drop_p * 2 ** 32)), 2 ** 32 - 1))
            keep = (h >= threshold).astype(jnp.float32)      # P(keep) = 1 - p
            scale = jnp.float32(1.0 / (1.0 - drop_p))
            out_ref[...] = (z * (keep * scale)).astype(out_ref.dtype)


def basic_block03(x, w, b, gamma, beta, *, p=0.5, seed=0):
    """x: (B, in_dim) f32; w: (out_dim, in_dim); b/gamma/beta: (out_dim,)."""
    B, in_dim = x.shape
    out_dim = w.shape[0]

    # Lane-dense padding (multiples of 128 on the feature / K axes).  Batch is
    # NOT tiled or padded: BN statistics need the full batch resident.
    K_pad = _round_up(in_dim, 128)
    N_pad = _round_up(out_dim, 128)
    TK = _pick_tile(K_pad)
    TN = _pick_tile(N_pad)

    # Glue (in a real model the weights would already be stored padded/bf16).
    xp = jnp.pad(x, ((0, 0), (0, K_pad - in_dim))).astype(jnp.bfloat16)
    wp = jnp.pad(w, ((0, N_pad - out_dim), (0, K_pad - in_dim))).astype(jnp.bfloat16)
    bp = jnp.pad(b, (0, N_pad - out_dim)).reshape(1, N_pad).astype(jnp.float32)
    gp = jnp.pad(gamma, (0, N_pad - out_dim)).reshape(1, N_pad).astype(jnp.float32)
    bep = jnp.pad(beta, (0, N_pad - out_dim)).reshape(1, N_pad).astype(jnp.float32)
    seed_arr = jnp.array([seed], dtype=jnp.int32)

    grid = (N_pad // TN, K_pad // TK)
    kernel = functools.partial(basic_block_kernel, drop_p=float(p))

    out_padded = pl.pallas_call(
        kernel,
        out_shape=jax.ShapeDtypeStruct((B, N_pad), jnp.float32),
        grid_spec=pltpu.PrefetchScalarGridSpec(
            num_scalar_prefetch=1,                 # seed -> SMEM
            grid=grid,
            in_specs=[
                pl.BlockSpec((B, TK), lambda n, k, s: (0, k)),   # x: full batch
                pl.BlockSpec((TN, TK), lambda n, k, s: (n, k)),  # w (out, in) layout
                pl.BlockSpec((1, TN), lambda n, k, s: (0, n)),   # bias
                pl.BlockSpec((1, TN), lambda n, k, s: (0, n)),   # gamma
                pl.BlockSpec((1, TN), lambda n, k, s: (0, n)),   # beta
            ],
            out_specs=pl.BlockSpec((B, TN), lambda n, k, s: (0, n)),
            scratch_shapes=[pltpu.VMEM((B, TN), jnp.float32)],   # f32 accumulator
        ),
        compiler_params=pltpu.CompilerParams(
            # feature tiles independent -> megacore; K is the reduction axis.
            dimension_semantics=("parallel", "arbitrary"),
            # Tiles are sized to fit comfortably in 32 MiB scoped VMEM, which is
            # also safe against v7x's 64 MiB physical VMEM per TensorCore.
            vmem_limit_bytes=32 * 1024 * 1024,
        ),
    )(seed_arr, xp, wp, bp, gp, bep)

    return out_padded[:, :out_dim]


def _reference_no_dropout(x, w, b, gamma, beta):
    y = x @ w.T + b
    mean = jnp.mean(y, axis=0, keepdims=True)
    var = jnp.mean((y - mean) ** 2, axis=0, keepdims=True)
    z = gamma * (y - mean) * jax.lax.rsqrt(var + BN_EPS) + beta
    return jnp.maximum(z, 0.0)


if __name__ == "__main__":
    B, IN_DIM, OUT_DIM, P = 8, 16, 32, 0.5

    key = jax.random.PRNGKey(0)
    kx, kw, kb = jax.random.split(key, 3)

    x = jax.random.normal(kx, (B, IN_DIM), dtype=jnp.float32)
    bound = 1.0 / (IN_DIM ** 0.5)
    w = jax.random.uniform(kw, (OUT_DIM, IN_DIM), jnp.float32, -bound, bound)
    b = jax.random.uniform(kb, (OUT_DIM,), jnp.float32, -bound, bound)
    gamma = jnp.ones((OUT_DIM,), jnp.float32)
    beta = jnp.zeros((OUT_DIM,), jnp.float32)

    # Numerical check of Linear+BN+ReLU with dropout disabled (p=0).
    out0 = basic_block03(x, w, b, gamma, beta, p=0.0, seed=0)
    jax.block_until_ready(out0)
    ref0 = _reference_no_dropout(x, w, b, gamma, beta)
    assert out0.shape == (B, OUT_DIM)
    assert bool(jnp.allclose(out0, ref0, atol=5e-2)), "mismatch vs reference (p=0)"

    # Real configuration (p=0.5, training-mode dropout).
    out = basic_block03(x, w, b, gamma, beta, p=P, seed=0)
    jax.block_until_ready(out)
    assert out.shape == (B, OUT_DIM)
    assert bool(jnp.all(out >= 0.0))  # post-ReLU, post-dropout outputs are non-negative

    print("KERNEL_OK")
</pallas_src>

<mosaic_0001>
module attributes {stable_mosaic.version = 11 : i64} {
  func.func @basic_block_kernel(%arg0: i32, %arg1: i32, %arg2: memref<1xi32, #tpu.memory_space<smem>>, %arg3: memref<8x128xbf16, #tpu.memory_space<vmem>>, %arg4: memref<128x128xbf16, #tpu.memory_space<vmem>>, %arg5: memref<1x128xf32, #tpu.memory_space<vmem>>, %arg6: memref<1x128xf32, #tpu.memory_space<vmem>>, %arg7: memref<1x128xf32, #tpu.memory_space<vmem>>, %arg8: memref<8x128xf32, #tpu.memory_space<vmem>>, %arg9: memref<8x128xf32, #tpu.memory_space<vmem>>) attributes {dimension_semantics = [#tpu.dimension_semantics<parallel>, #tpu.dimension_semantics<arbitrary>], iteration_bounds = array<i64: 1, 1>, scalar_prefetch = 1 : i64, scratch_operands = 1 : i64, tpu.core_type = #tpu.core_type<tc>, window_params = [{transform_indices = @transform_0, window_bounds = array<i64: 8, 128>}, {transform_indices = @transform_1, window_bounds = array<i64: 128, 128>}, {transform_indices = @transform_2, window_bounds = array<i64: 1, 128>}, {transform_indices = @transform_3, window_bounds = array<i64: 1, 128>}, {transform_indices = @transform_4, window_bounds = array<i64: 1, 128>}, {transform_indices = @transform_5, window_bounds = array<i64: 8, 128>}]} {
    %c0_i32 = arith.constant 0 : i32
    %0 = arith.cmpi eq, %arg1, %c0_i32 : i32
    %1 = arith.extui %0 : i1 to i32
    %c0_i32_0 = arith.constant 0 : i32
    %2 = arith.cmpi ne, %1, %c0_i32_0 : i32
    scf.if %2 {
      %cst_10 = arith.constant 0.000000e+00 : f32
      %12 = vector.broadcast %cst_10 : f32 to vector<8x128xf32>
      %c0_11 = arith.constant 0 : index
      %c0_12 = arith.constant 0 : index
      %13 = vector.load %arg9[%c0_11, %c0_12] : memref<8x128xf32, #tpu.memory_space<vmem>>, vector<8x128xf32>
      tpu.vector_store %arg9[%c0_11, %c0_12], %12 {strides = array<i32>} : memref<8x128xf32, #tpu.memory_space<vmem>>, vector<8x128xf32>,
    } else {
    }
    %c0 = arith.constant 0 : index
    %c0_1 = arith.constant 0 : index
    %3 = vector.load %arg9[%c0, %c0_1] : memref<8x128xf32, #tpu.memory_space<vmem>>, vector<8x128xf32>
    %c0_2 = arith.constant 0 : index
    %c0_3 = arith.constant 0 : index
    %4 = vector.load %arg3[%c0_2, %c0_3] : memref<8x128xbf16, #tpu.memory_space<vmem>>, vector<8x128xbf16>
    %c0_4 = arith.constant 0 : index
    %c0_5 = arith.constant 0 : index
    %5 = vector.load %arg4[%c0_4, %c0_5] : memref<128x128xbf16, #tpu.memory_space<vmem>>, vector<128x128xbf16>
    %cst = arith.constant dense<0.000000e+00> : vector<8x128xf32>
    %6 = tpu.matmul %4, %5, %cst {dimension_numbers = #tpu.dot_dimension_numbers<[1], [1], [0], [0], [0, 0, 1, 0], [], []>} : vector<8x128xbf16>, vector<128x128xbf16>, vector<8x128xf32> -> vector<8x128xf32>
    %7 = arith.addf %3, %6 : vector<8x128xf32>
    %c0_6 = arith.constant 0 : index
    %c0_7 = arith.constant 0 : index
    %8 = vector.load %arg9[%c0_6, %c0_7] : memref<8x128xf32, #tpu.memory_space<vmem>>, vector<8x128xf32>
    tpu.vector_store %arg9[%c0_6, %c0_7], %7 {strides = array<i32>} : memref<8x128xf32, #tpu.memory_space<vmem>>, vector<8x128xf32>,
    %c0_i32_8 = arith.constant 0 : i32
    %9 = arith.cmpi eq, %arg1, %c0_i32_8 : i32
    %10 = arith.extui %9 : i1 to i32
    %c0_i32_9 = arith.constant 0 : i32
    %11 = arith.cmpi ne, %10, %c0_i32_9 : i32
    scf.if %11 {
      %c0_10 = arith.constant 0 : index
      %c0_11 = arith.constant 0 : index
      %12 = vector.load %arg9[%c0_10, %c0_11] : memref<8x128xf32, #tpu.memory_space<vmem>>, vector<8x128xf32>
      %c0_12 = arith.constant 0 : index
      %c0_13 = arith.constant 0 : index
      %13 = vector.load %arg5[%c0_12, %c0_13] : memref<1x128xf32, #tpu.memory_space<vmem>>, vector<1x128xf32>
      %14 = vector.broadcast %13 : vector<1x128xf32> to vector<8x128xf32>
      %15 = arith.addf %12, %14 : vector<8x128xf32>
      %cst_14 = arith.constant dense<0.000000e+00> : vector<128xf32>
      %16 = vector.multi_reduction <add>, %15, %cst_14 [0] : vector<8x128xf32> to vector<128xf32>
      %17 = vector.shape_cast %16 : vector<128xf32> to vector<1x128xf32>
      %cst_15 = arith.constant 8.000000e+00 : f32
      %18 = vector.broadcast %cst_15 : f32 to vector<1x128xf32>
      %19 = arith.divf %17, %18 : vector<1x128xf32>
      %20 = vector.broadcast %19 : vector<1x128xf32> to vector<8x128xf32>
      %21 = arith.subf %15, %20 : vector<8x128xf32>
      %22 = arith.mulf %21, %21 : vector<8x128xf32>
      %cst_16 = arith.constant dense<0.000000e+00> : vector<128xf32>
      %23 = vector.multi_reduction <add>, %22, %cst_16 [0] : vector<8x128xf32> to vector<128xf32>
      %24 = vector.shape_cast %23 : vector<128xf32> to vector<1x128xf32>
      %cst_17 = arith.constant 8.000000e+00 : f32
      %25 = vector.broadcast %cst_17 : f32 to vector<1x128xf32>
      %26 = arith.divf %24, %25 : vector<1x128xf32>
      %c0_18 = arith.constant 0 : index
      %c0_19 = arith.constant 0 : index
      %27 = vector.load %arg6[%c0_18, %c0_19] : memref<1x128xf32, #tpu.memory_space<vmem>>, vector<1x128xf32>
      %cst_20 = arith.constant 9.99999974E-6 : f32
      %28 = vector.broadcast %cst_20 : f32 to vector<1x128xf32>
      %29 = arith.addf %26, %28 : vector<1x128xf32>
      %30 = math.rsqrt %29 : vector<1x128xf32>
      %31 = vector.broadcast %30 : vector<1x128xf32> to vector<8x128xf32>
      %32 = arith.mulf %21, %31 : vector<8x128xf32>
      %33 = vector.broadcast %27 : vector<1x128xf32> to vector<8x128xf32>
      %34 = arith.mulf %33, %32 : vector<8x128xf32>
      %c0_21 = arith.constant 0 : index
      %c0_22 = arith.constant 0 : index
      %35 = vector.load %arg7[%c0_21, %c0_22] : memref<1x128xf32, #tpu.memory_space<vmem>>, vector<1x128xf32>
      %36 = vector.broadcast %35 : vector<1x128xf32> to vector<8x128xf32>
      %37 = arith.addf %34, %36 : vector<8x128xf32>
      %cst_23 = arith.constant 0.000000e+00 : f32
      %38 = vector.broadcast %cst_23 : f32 to vector<8x128xf32>
      %39 = arith.maximumf %37, %38 : vector<8x128xf32>
      %c0_24 = arith.constant 0 : index
      %c0_25 = arith.constant 0 : index
      %40 = vector.load %arg8[%c0_24, %c0_25] : memref<8x128xf32, #tpu.memory_space<vmem>>, vector<8x128xf32>
      tpu.vector_store %arg8[%c0_24, %c0_25], %39 {strides = array<i32>} : memref<8x128xf32, #tpu.memory_space<vmem>>, vector<8x128xf32>,
    } else {
    }
    return
  }
  func.func @transform_0(%arg0: i32, %arg1: i32, %arg2: memref<1xi32, #tpu.memory_space<smem>>) -> (i32, i32) {
    %c0_i32 = arith.constant 0 : i32
    %c0_i32_0 = arith.constant 0 : i32
    return %c0_i32, %arg1 : i32, i32
  }
  func.func @transform_1(%arg0: i32, %arg1: i32, %arg2: memref<1xi32, #tpu.memory_space<smem>>) -> (i32, i32) {
    %c0_i32 = arith.constant 0 : i32
    return %arg0, %arg1 : i32, i32
  }
  func.func @transform_2(%arg0: i32, %arg1: i32, %arg2: memref<1xi32, #tpu.memory_space<smem>>) -> (i32, i32) {
    %c0_i32 = arith.constant 0 : i32
    %c0_i32_0 = arith.constant 0 : i32
    return %c0_i32, %arg0 : i32, i32
  }
  func.func @transform_3(%arg0: i32, %arg1: i32, %arg2: memref<1xi32, #tpu.memory_space<smem>>) -> (i32, i32) {
    %c0_i32 = arith.constant 0 : i32
    %c0_i32_0 = arith.constant 0 : i32
    return %c0_i32, %arg0 : i32, i32
  }
  func.func @transform_4(%arg0: i32, %arg1: i32, %arg2: memref<1xi32, #tpu.memory_space<smem>>) -> (i32, i32) {
    %c0_i32 = arith.constant 0 : i32
    %c0_i32_0 = arith.constant 0 : i32
    return %c0_i32, %arg0 : i32, i32
  }
  func.func @transform_5(%arg0: i32, %arg1: i32, %arg2: memref<1xi32, #tpu.memory_space<smem>>) -> (i32, i32) {
    %c0_i32 = arith.constant 0 : i32
    %c0_i32_0 = arith.constant 0 : i32
    return %c0_i32, %arg0 : i32, i32
  }
}

</mosaic_0001>

<llo_original>
// kernel: tpu_custom_call.1
$region0: #{tpu_custom_call.1}
  #allocation0 [shape = 'u32[]', space=smem, size = 0x4, offset = 0x4, fixed_abs, tag = 'smem constant byte address 0x4 - core index']
  #allocation1 [shape = 'u32[144,128]{1,0:T(1,128)}', space=vmem, size = 0x12000, scoped, tag = 'internal scratch']
  #allocation2 [shape = 'f32[8,128]{1,0:T(8,128)}', space=vmem, size = 0x1000, scoped, tag = 'scratch operand']
  #allocation3 [shape = 's32[1]{0}', space=sflag, size = 0x4, scoped, tag = 'scoped memory for tpu_custom_call.1']
  #allocation4 [shape = 's32[1]{0:T(128)S(6)}', space=smem, size = 0x200, scoped, tag = 'prefetched SMEM operand 0']
  %s0 = inlined_call_operand.<no memory space> [shape: s32[1], index: 0, kind: input, shape index: {}]
  %s1 = inlined_call_operand.hbm [shape: bf16[8,128], index: 1, kind: input, shape index: {}]
  %s2 = inlined_call_operand.hbm [shape: bf16[128,128], index: 2, kind: input, shape index: {}]
  %s3 = inlined_call_operand.vmem [shape: f32[1,128], index: 3, kind: input, shape index: {}]
  %s4 = inlined_call_operand.vmem [shape: f32[1,128], index: 4, kind: input, shape index: {}]
  %s5 = inlined_call_operand.vmem [shape: f32[1,128], index: 5, kind: input, shape index: {}]
  %s6 = inlined_call_operand.hbm [shape: f32[8,128], index: 6, kind: output, shape index: {}]
  %s7 = sld [smem:[#allocation0]]
  $region46: #{tpu_custom_call.1} parent=0
    _
  %s9 = ssub.s32 1, %s7
  %s10 = scalar_select 0, %s9, %s7
  %11 = sst [smem:[#allocation4]] %s0
  $region1: #{tpu_custom_call.1} parent=0
    #allocation5 [shape = 'u8[2048]{0}', space=vmem, size = 0x800, scoped, tag = 'input window, operand 1, single buffered']
    #allocation6 [shape = 's32[1]{0}', space=sflag, size = 0x4, scoped, tag = 'scoped memory for tpu_custom_call.1']
    #allocation7 [shape = 's32[1]{0}', space=sflag, size = 0x4, scoped, tag = 'scoped memory for tpu_custom_call.1']
    #allocation8 [shape = 'u8[32768]{0}', space=vmem, size = 0x8000, scoped, tag = 'input window, operand 2, single buffered']
    #allocation9 [shape = 's32[1]{0}', space=sflag, size = 0x4, scoped, tag = 'scoped memory for tpu_custom_call.1']
    #allocation10 [shape = 'u8[4096]{0}', space=vmem, size = 0x1000, scoped, tag = 'output window, operand 0, single buffered']
    %12 = vsyncpa [#allocation6], 0
    %13 = vsyncpa [#allocation9], 0
    %14 = vsyncpa [#allocation7], 0
    // Predicated region
    $region2: #{tpu_custom_call.1} parent=1 // pred_check
      _
    $region3: #{tpu_custom_call.1} parent=1 // pred_check_branch
      %16 = sbr.rel (0) target = $region5
    $region4: #{tpu_custom_call.1} parent=1 // pred_region
      %s18 = ssub.s32 64, 64
      %19 = vsyncadd [#allocation6], %s18
      %s21 = sshll.u32 [#allocation5], 4
      %s22 = int_to_ptr.vmem [resolvable:$true] %s21
      %24 = dma.hbm_to_vmem [thread:$0]  %s1, 64, %s22, [#allocation6]
    $region5: #{tpu_custom_call.1} parent=1 // pred_fallthru
      _
    // Predicated region
    $region6: #{tpu_custom_call.1} parent=1 // pred_check
      _
    $region7: #{tpu_custom_call.1} parent=1 // pred_check_branch
      %26 = sbr.rel (0) target = $region9
    $region8: #{tpu_custom_call.1} parent=1 // pred_region
      %s28 = ssub.s32 1024, 1024
      %29 = vsyncadd [#allocation9], %s28
      %s30 = sshll.u32 [#allocation8], 4
      %s31 = int_to_ptr.vmem [resolvable:$true] %s30
      %36 = dma.hbm_to_vmem [thread:$0]  %s2, 1024, %s31, [#allocation9], 64, 64, 4
    $region9: #{tpu_custom_call.1} parent=1 // pred_fallthru
      _
    // Predicated region
    $region10: #{tpu_custom_call.1} parent=1 // pred_check
      _
    $region11: #{tpu_custom_call.1} parent=1 // pred_check_branch
      %38 = sbr.rel (0) target = $region13
    $region12: #{tpu_custom_call.1} parent=1 // pred_region
      _
    $region13: #{tpu_custom_call.1} parent=1 // pred_fallthru
      _
    // Predicated region
    $region14: #{tpu_custom_call.1} parent=1 // pred_check
      _
    $region15: #{tpu_custom_call.1} parent=1 // pred_check_branch
      %40 = sbr.rel (0) target = $region17
    $region16: #{tpu_custom_call.1} parent=1 // pred_region
      _
    $region17: #{tpu_custom_call.1} parent=1 // pred_fallthru
      _
    // Predicated region
    $region18: #{tpu_custom_call.1} parent=1 // pred_check
      _
    $region19: #{tpu_custom_call.1} parent=1 // pred_check_branch
      %42 = sbr.rel (0) target = $region21
    $region20: #{tpu_custom_call.1} parent=1 // pred_region
      _
    $region21: #{tpu_custom_call.1} parent=1 // pred_fallthru
      _
    // Predicated region
    $region22: #{tpu_custom_call.1} parent=1 // pred_check
      _
    $region23: #{tpu_custom_call.1} parent=1 // pred_check_branch
      %44 = sbr.rel (0) target = $region25
    $region24: #{tpu_custom_call.1} parent=1 // pred_region
      %45 = dma.done [#allocation6], 64
    $region25: #{tpu_custom_call.1} parent=1 // pred_fallthru
      _
    // Predicated region
    $region26: #{tpu_custom_call.1} parent=1 // pred_check
      _
    $region27: #{tpu_custom_call.1} parent=1 // pred_check_branch
      %47 = sbr.rel (0) target = $region29
    $region28: #{tpu_custom_call.1} parent=1 // pred_region
      %48 = dma.done [#allocation9], 1024
    $region29: #{tpu_custom_call.1} parent=1 // pred_fallthru
      _
    %p50 = scmp.eq.s32.totalorder 0, 0
    // Predicated region
    $region30: #{tpu_custom_call.1} parent=1 // pred_check
      %p51 = pneg %p50
    $region31: #{tpu_custom_call.1} parent=1 // pred_check_branch
      %53 = sbr.rel (%p51) target = $region33
    $region32: #{tpu_custom_call.1} parent=1 // pred_region
      %54 = vst [vmem:[#allocation2] sm:$0xff] 0.0
    $region33: #{tpu_custom_call.1} parent=1 // pred_fallthru
      _
    %v55 = vld [vmem:[#allocation2] sm:$0xff]
    %v56 = vld [vmem:[#allocation5] sm:$0xf]
    %v57 = vld [vmem:[#allocation8] sm:$0xf]
    %v58 = vld [vmem:[#allocation8 + $0x4] sm:$0xf]
    %v59 = vld [vmem:[#allocation8 + $0x8] sm:$0xf]
    %v60 = vld [vmem:[#allocation8 + $0xc] sm:$0xf]
    %v61 = vld [vmem:[#allocation8 + $0x10] sm:$0xf]
    %v62 = vld [vmem:[#allocation8 + $0x14] sm:$0xf]
    %v63 = vld [vmem:[#allocation8 + $0x18] sm:$0xf]
    %v64 = vld [vmem:[#allocation8 + $0x1c] sm:$0xf]
    %v65 = vld [vmem:[#allocation8 + $0x20] sm:$0xf]
    %v66 = vld [vmem:[#allocation8 + $0x24] sm:$0xf]
    %v67 = vld [vmem:[#allocation8 + $0x28] sm:$0xf]
    %v68 = vld [vmem:[#allocation8 + $0x2c] sm:$0xf]
    %v69 = vld [vmem:[#allocation8 + $0x30] sm:$0xf]
    %v70 = vld [vmem:[#allocation8 + $0x34] sm:$0xf]
    %v71 = vld [vmem:[#allocation8 + $0x38] sm:$0xf]
    %v72 = vld [vmem:[#allocation8 + $0x3c] sm:$0xf]
    %v89 = vunpack.c.l.b16 %v57
    %v90 = vunpack.c.l.b16 %v58
    %v91 = vunpack.c.l.b16 %v59
    %v92 = vunpack.c.l.b16 %v60
    %v93 = vunpack.c.l.b16 %v61
    %v94 = vunpack.c.l.b16 %v62
    %v95 = vunpack.c.l.b16 %v63
    %v96 = vunpack.c.l.b16 %v64
    %v97 = vunpack.c.l.b16 %v65
    %v98 = vunpack.c.l.b16 %v66
    %v99 = vunpack.c.l.b16 %v67
    %v100 = vunpack.c.l.b16 %v68
    %v101 = vunpack.c.l.b16 %v69
    %v102 = vunpack.c.l.b16 %v70
    %v103 = vunpack.c.l.b16 %v71
    %v104 = vunpack.c.l.b16 %v72
    %v105 = vpack.c.b16 %v90, %v89
    %v106 = vpack.c.b16 %v92, %v91
    %v107 = vpack.c.b16 %v94, %v93
    %v108 = vpack.c.b16 %v96, %v95
    %v109 = vpack.c.b16 %v98, %v97
    %v110 = vpack.c.b16 %v100, %v99
    %v111 = vpack.c.b16 %v102, %v101
    %v112 = vpack.c.b16 %v104, %v103
    %121 = vmatprep.subr.bf16.mxu0 0
    %122 = vmatpush1.bf16.xpose.msra.mxu0 %v105
    %123 = vmatprep.subr.bf16.mxu0 0
    %124 = vmatpush1.bf16.xpose.msra.mxu0 %v106
    %125 = vmatprep.subr.bf16.mxu0 0
    %126 = vmatpush1.bf16.xpose.msra.mxu0 %v107
    %127 = vmatprep.subr.bf16.mxu0 0
    %128 = vmatpush1.bf16.xpose.msra.mxu0 %v108
    %129 = vmatprep.subr.bf16.mxu0 0
    %130 = vmatpush1.bf16.xpose.msra.mxu0 %v109
    %131 = vmatprep.subr.bf16.mxu0 0
    %132 = vmatpush1.bf16.xpose.msra.mxu0 %v110
    %133 = vmatprep.subr.bf16.mxu0 0
    %134 = vmatpush1.bf16.xpose.msra.mxu0 %v111
    %135 = vmatprep.subr.bf16.mxu0 0
    %136 = vmatpush1.bf16.xpose.msra.mxu0 %v112
    %137 = vmatprep.subr.bf16.mxu0 0
    %138 = vmatpush1.bf16.xpose.msra.mxu0 0
    %139 = vmatprep.subr.bf16.mxu0 0
    %140 = vmatpush1.bf16.xpose.msra.mxu0 0
    %141 = vmatprep.subr.bf16.mxu0 0
    %142 = vmatpush1.bf16.xpose.msra.mxu0 0
    %143 = vmatprep.subr.bf16.mxu0 0
    %144 = vmatpush1.bf16.xpose.msra.mxu0 0
    %145 = vmatprep.subr.bf16.mxu0 0
    %146 = vmatpush1.bf16.xpose.msra.mxu0 0
    %147 = vmatprep.subr.bf16.mxu0 0
    %148 = vmatpush1.bf16.xpose.msra.mxu0 0
    %149 = vmatprep.subr.bf16.mxu0 0
    %150 = vmatpush1.bf16.xpose.msra.mxu0 0
    %151 = vmatprep.subr.bf16.mxu0 0
    %152 = vmatpush1.bf16.xpose.msra.mxu0 0
    %153 = vmatprep.mubr.bf16.mxu0 0
    %154 = vmatmul.mubr.bf16.gmra.mrb[0].mxu0 %v56
    %v155 = vpop.f32.mrb[0].mxu0
    %v156 = vadd.f32 0.0, %v155
    %v157 = vpop.f32.mrb[0].mxu0
    %v158 = vpop.f32.mrb[0].mxu0
    %v159 = vpop.f32.mrb[0].mxu0
    %160 = vdwg.mxu0
    %v161 = vadd.f32 %v55, %v156
    %162 = vst [vmem:[#allocation2] sm:$0xff] %v161
    // Predicated region
    $region34: #{tpu_custom_call.1} parent=1 // pred_check
      %p163 = pneg %p50
    $region35: #{tpu_custom_call.1} parent=1 // pred_check_branch
      %165 = sbr.rel (%p163) target = $region37
    $region36: #{tpu_custom_call.1} parent=1 // pred_region
      %v166 = vld [vmem:[#allocation2] sm:$0xff]
      %v167 = vld [vmem:[%s3] sm:$0x1]
      %v169 = vlaneseq
      %v170 = vshrl.u32 %v169, 7
      %v171 = vsub.s32 0, %v170
      %v172 = vrot.slane %v167, %v171
      %v174 = vadd.f32 %v166, %v172
      %v175 = vrot.slane %v174, 4
      %v176 = vadd.f32 %v174, %v175
      %v177 = vrot.slane %v176, 2
      %v178 = vadd.f32 %v176, %v177
      %v179 = vrot.slane %v178, 1
      %v180 = vadd.f32 %v178, %v179
      %v181 = vrcp.pop 8.0
      %v182 = vmul.f32 %v180, %v181
      %v183 = vsub.f32 %v174, %v182
      %v184 = vmul.f32 %v183, %v183
      %v185 = vrot.slane %v184, 4
      %v186 = vadd.f32 %v184, %v185
      %v187 = vrot.slane %v186, 2
      %v188 = vadd.f32 %v186, %v187
      %v189 = vrot.slane %v188, 1
      %v190 = vadd.f32 %v188, %v189
      %v191 = vmul.f32 %v190, %v181
      %v192 = vld [vmem:[%s4] sm:$0x1]
      %v193 = vadd.f32 %v191, 1e-05
      %v194 = vrsqrt.pop %v193
      %v195 = vmul.f32 %v183, %v194
      %v197 = vlaneseq
      %v198 = vshrl.u32 %v197, 7
      %v199 = vsub.s32 0, %v198
      %v200 = vrot.slane %v192, %v199
      %v202 = vmul.f32 %v200, %v195
      %v203 = vld [vmem:[%s5] sm:$0x1]
      %v205 = vlaneseq
      %v206 = vshrl.u32 %v205, 7
      %v207 = vsub.s32 0, %v206
      %v208 = vrot.slane %v203, %v207
      %v210 = vadd.f32 %v202, %v208
      %v211 = vmax.f32 %v210, 0.0
      %212 = vst [vmem:[#allocation10] sm:$0xff] %v211
    $region37: #{tpu_custom_call.1} parent=1 // pred_fallthru
      _
    // Predicated region
    $region38: #{tpu_custom_call.1} parent=1 // pred_check
      _
    $region39: #{tpu_custom_call.1} parent=1 // pred_check_branch
      %214 = sbr.rel (0) target = $region41
    $region40: #{tpu_custom_call.1} parent=1 // pred_region
      %s216 = ssub.s32 128, 128
      %217 = vsyncadd [#allocation7], %s216
      %s219 = sshll.u32 [#allocation10], 4
      %s220 = int_to_ptr.vmem [resolvable:$true] %s219
      %222 = dma.vmem_to_hbm [thread:$0]  %s220, 128, %s6, [#allocation7]
    $region41: #{tpu_custom_call.1} parent=1 // pred_fallthru
      _
    // Predicated region
    $region42: #{tpu_custom_call.1} parent=1 // pred_check
      _
    $region43: #{tpu_custom_call.1} parent=1 // pred_check_branch
      %224 = sbr.rel (0) target = $region45
    $region44: #{tpu_custom_call.1} parent=1 // pred_region
      %225 = dma.done [#allocation7], 128
    $region45: #{tpu_custom_call.1} parent=1 // pred_fallthru
      _
    %226 = vsyncpa [#allocation6], 1
    %227 = vsyncpa [#allocation9], 1
    %228 = vsyncpa [#allocation7], 1

</llo_original>
